<compile_context>
chip_gen: v7x
topology: tpu7x:2x2x1
jax: 0.10.0
libtpu: 0.0.40
codegen_flags: <defaults>
</compile_context>

<pallas_src>
import math
from functools import partial

import jax
import jax.numpy as jnp
from jax import lax
from jax.experimental import pallas as pl
from jax.experimental.pallas import tpu as pltpu


# ----------------------------------------------------------------------------
# Per-generation hardware settings
# ----------------------------------------------------------------------------

def _tpu_generation():
    try:
        kind = jax.devices()[0].device_kind.lower()
    except Exception:
        return 6
    for g in (7, 6, 5, 4):
        if f"v{g}" in kind:
            return g
    return 6


def _vmem_capacity_bytes(gen):
    try:
        return int(pltpu.get_tpu_info().vmem_capacity_bytes)
    except Exception:
        return 64 * 1024 * 1024 if gen >= 7 else 128 * 1024 * 1024


_GEN = _tpu_generation()
_VMEM_PHYS = _vmem_capacity_bytes(_GEN)
# ~96 MiB scoped limit on 128 MiB parts (v5e/v6e), ~48 MiB on 64 MiB parts (v7x)
_VMEM_LIMIT = min(_VMEM_PHYS * 3 // 4, 96 * 1024 * 1024)
_TARGET_TM = 512 if _VMEM_PHYS >= 128 * 1024 * 1024 else 256   # activation row tile
_TARGET_TI = 1024 if _VMEM_PHYS >= 128 * 1024 * 1024 else 512  # FFN intermediate block
_ATTN_TQ = 128
_ATTN_TK = 256 if _GEN >= 6 else 128   # 2x256^2 MXU on v6e/v7x, 4x128^2 on v5e
_EXP_BF16 = _GEN >= 6                  # bf16 EUP only on v6e/v7x


def _row_tile(m, target):
    """Largest multiple-of-8 divisor of m <= target, else m (full)."""
    if m <= target:
        return m
    for t in range(target, 7, -1):
        if t % 8 == 0 and m % t == 0:
            return t
    return m


def _lane_tile(n, target):
    """Largest multiple-of-128 divisor of n <= target, else n (full)."""
    if n <= target:
        return n
    for t in range(target - target % 128, 127, -128):
        if n % t == 0:
            return t
    return n


def _cp(*sems):
    return pltpu.CompilerParams(dimension_semantics=sems,
                                vmem_limit_bytes=_VMEM_LIMIT)


# ----------------------------------------------------------------------------
# Pallas kernels
# ----------------------------------------------------------------------------

def linear_kernel(x_ref, w_ref, b_ref, o_ref):
    # o = x @ w + b    x:(TM,K)  w:(K,N) bf16 (resident)  b:(1,N) f32
    o = (jnp.dot(x_ref[...].astype(jnp.bfloat16), w_ref[...],
                 preferred_element_type=jnp.float32) + b_ref[...])
    o_ref[...] = o.astype(o_ref.dtype)


def ln_kernel(x_ref, g_ref, b_ref, o_ref, *, eps):
    # Pure LayerNorm (no residual), f32 math.
    x = x_ref[...].astype(jnp.float32)
    mu = jnp.mean(x, axis=-1, keepdims=True)
    var = jnp.mean((x - mu) ** 2, axis=-1, keepdims=True)
    o_ref[...] = ((x - mu) * lax.rsqrt(var + eps) * g_ref[...]
                  + b_ref[...]).astype(o_ref.dtype)


def qkv_linear_kernel(x_ref, w_ref, b_ref, o_ref, *, nh3, dh):
    # Fused Q|K|V projection, written head-major: o[(q0..q_nh-1|k..|v..), tm, dh].
    # The per-head stores fold the (B,S,3H)->(3nh,M,dh) "transpose" into VMEM
    # lane slices (no extra HBM round trip).
    y = (jnp.dot(x_ref[...].astype(jnp.bfloat16), w_ref[...],
                 preferred_element_type=jnp.float32) + b_ref[...])
    y = y.astype(o_ref.dtype)
    for h in range(nh3):
        o_ref[h] = y[:, h * dh:(h + 1) * dh]


def flash_attn_kernel(q_ref, k_ref, v_ref, mask_ref, o_ref,
                      m_sc, l_sc, acc_sc, *, exp_bf16):
    # Flash attention, grid (B, nh, q-tiles, kv-tiles), kv innermost.
    # q/k/v blocks (1,T,dh) bf16 (softmax scale pre-folded into the Q weights),
    # mask block (1,1,TK) f32 keep-mask.
    ki = pl.program_id(3)

    @pl.when(ki == 0)
    def _():
        m_sc[...] = jnp.full(m_sc.shape, -jnp.inf, jnp.float32)
        l_sc[...] = jnp.zeros(l_sc.shape, jnp.float32)
        acc_sc[...] = jnp.zeros(acc_sc.shape, jnp.float32)

    q = q_ref[0]                                  # (TQ, dh) bf16 (pre-scaled)
    k = k_ref[0]                                  # (TK, dh) bf16
    v = v_ref[0]                                  # (TK, dh) bf16

    s = lax.dot_general(q, k, (((1,), (1,)), ((), ())),
                        preferred_element_type=jnp.float32)      # (TQ, TK)
    s = s + jnp.where(mask_ref[0] > 0.5, 0.0, -1e9)              # (1, TK) bias

    m_prev = m_sc[...]
    m_new = jnp.maximum(m_prev, jnp.max(s, axis=-1, keepdims=True))
    alpha = jnp.exp(m_prev - m_new)
    if exp_bf16:
        # bf16 exp ~doubles EUP throughput on v6e/v7x; p feeds a bf16 matmul anyway.
        p = jnp.exp((s - m_new).astype(jnp.bfloat16))
    else:
        p = jnp.exp(s - m_new).astype(jnp.bfloat16)
    l_sc[...] = alpha * l_sc[...] + jnp.sum(p.astype(jnp.float32),
                                            axis=-1, keepdims=True)
    acc_sc[...] = alpha * acc_sc[...] + jnp.dot(
        p, v, preferred_element_type=jnp.float32)
    m_sc[...] = m_new

    @pl.when(ki == pl.num_programs(3) - 1)
    def _():
        o_ref[0] = (acc_sc[...] * pl.reciprocal(l_sc[...], approx=True)
                    ).astype(o_ref.dtype)


def proj_add_ln_kernel(ctx_ref, res_ref, w_ref, b_ref, g_ref, beta_ref, o_ref,
                       *, eps, nh):
    # Merge heads (in-VMEM lane concat), output projection, residual add, LN.
    x = jnp.concatenate([ctx_ref[h] for h in range(nh)], axis=-1)  # (TM, H) bf16
    y = (jnp.dot(x, w_ref[...], preferred_element_type=jnp.float32)
         + b_ref[...] + res_ref[...].astype(jnp.float32))
    mu = jnp.mean(y, axis=-1, keepdims=True)
    var = jnp.mean((y - mu) ** 2, axis=-1, keepdims=True)
    o_ref[...] = ((y - mu) * lax.rsqrt(var + eps) * g_ref[...]
                  + beta_ref[...]).astype(o_ref.dtype)


def ffn_add_ln_kernel(x_ref, w1_ref, b1_ref, w2_ref, b2_ref, g_ref, beta_ref,
                      o_ref, acc_ref, *, eps):
    # Blocked FFN: grid (row-tiles, I-blocks), I axis is a reduction.
    # acc += gelu(x @ w1[:, blk] + b1[blk]) @ w2[blk, :]; residual+LN on last blk.
    ii = pl.program_id(1)

    @pl.when(ii == 0)
    def _():
        acc_ref[...] = jnp.zeros_like(acc_ref)

    x = x_ref[...]
    h = (jnp.dot(x.astype(jnp.bfloat16), w1_ref[...],
                 preferred_element_type=jnp.float32) + b1_ref[...])
    # TODO(synk): HF XLM-R uses exact erf-GELU; tanh approximation here.
    h = jax.nn.gelu(h, approximate=True)
    acc_ref[...] += jnp.dot(h.astype(jnp.bfloat16), w2_ref[...],
                            preferred_element_type=jnp.float32)

    @pl.when(ii == pl.num_programs(1) - 1)
    def _():
        y = acc_ref[...] + b2_ref[...] + x.astype(jnp.float32)
        mu = jnp.mean(y, axis=-1, keepdims=True)
        var = jnp.mean((y - mu) ** 2, axis=-1, keepdims=True)
        o_ref[...] = ((y - mu) * lax.rsqrt(var + eps) * g_ref[...]
                      + beta_ref[...]).astype(o_ref.dtype)


def bilstm_kernel(xg_hbm, whh_ref, out_ref, buf, sem, *, seq_len, hd, bc):
    # xg_hbm : (B, S, 8*hd) bf16 in HBM: [fwd gates | bwd gates], biases folded in.
    # whh_ref: (hd, 4*hd) bf16 forward recurrent weights (VMEM resident).
    # out_ref: (bc, 2*hd) f32 == lstm_out[:, -1, :] for this batch chunk.
    # buf    : (2, bc, 1, 8*hd) bf16 double buffer; sem: DMA((2,))
    #
    # Only the states the classifier reads are computed:
    #   * forward hidden after the full recurrence (t = S-1)
    #   * backward hidden at position S-1, which is the backward direction's
    #     FIRST step from zero state -> its recurrent matmul is zero, so it
    #     only needs the (already projected) input gates at t = S-1.
    b0 = pl.program_id(0) * bc
    G = 4 * hd

    def copy_desc(t, slot):
        return pltpu.make_async_copy(
            xg_hbm.at[pl.ds(b0, bc), pl.ds(t, 1), :],
            buf.at[slot], sem.at[slot])

    copy_desc(0, 0).start()
    whh = whh_ref[...]

    def step(t, carry):
        hf, cf = carry
        slot = t % 2
        copy_desc(t, slot).wait()

        @pl.when(t + 1 < seq_len)
        def _():
            copy_desc(t + 1, 1 - slot).start()

        xg_t = buf[slot].astype(jnp.float32)[:, 0, :]              # (bc, 8*hd)
        gates = xg_t[:, :G] + jnp.dot(hf.astype(jnp.bfloat16), whh,
                                      preferred_element_type=jnp.float32)
        # PyTorch LSTM gate order: i, f, g, o
        i_g = jax.nn.sigmoid(gates[:, 0 * hd:1 * hd])
        f_g = jax.nn.sigmoid(gates[:, 1 * hd:2 * hd])
        g_g = jnp.tanh(gates[:, 2 * hd:3 * hd])
        o_g = jax.nn.sigmoid(gates[:, 3 * hd:4 * hd])
        cf = f_g * cf + i_g * g_g
        hf = o_g * jnp.tanh(cf)
        return hf, cf

    h0 = jnp.zeros((bc, hd), jnp.float32)
    hf, _ = lax.fori_loop(0, seq_len, step, (h0, h0))

    # Backward direction, first step at position S-1 (h_prev = c_prev = 0).
    last_slot = (seq_len - 1) % 2
    xb = buf[last_slot].astype(jnp.float32)[:, 0, G:]              # (bc, 4*hd)
    ib = jax.nn.sigmoid(xb[:, 0 * hd:1 * hd])
    gb = jnp.tanh(xb[:, 2 * hd:3 * hd])
    ob = jax.nn.sigmoid(xb[:, 3 * hd:4 * hd])
    hb = ob * jnp.tanh(ib * gb)

    out_ref[...] = jnp.concatenate([hf, hb], axis=-1)
    # TODO(synk): pad hd / 4*hd to multiples of 128 for lane-dense gate slices.


# ----------------------------------------------------------------------------
# pallas_call wrappers
# ----------------------------------------------------------------------------

def linear(x, w, b, out_dtype=jnp.bfloat16, target_tm=None):
    M, K = x.shape
    N = w.shape[1]
    tm = _row_tile(M, target_tm or _TARGET_TM)
    return pl.pallas_call(
        linear_kernel,
        out_shape=jax.ShapeDtypeStruct((M, N), out_dtype),
        grid=(M // tm,),
        in_specs=[pl.BlockSpec((tm, K), lambda i: (i, 0)),
                  pl.BlockSpec((K, N), lambda i: (0, 0)),
                  pl.BlockSpec((1, N), lambda i: (0, 0))],
        out_specs=pl.BlockSpec((tm, N), lambda i: (i, 0)),
        compiler_params=_cp("parallel"),
    )(x, w, b)


def layernorm(x, g, b, eps=1e-5, out_dtype=jnp.bfloat16):
    M, H = x.shape
    tm = _row_tile(M, _TARGET_TM)
    return pl.pallas_call(
        partial(ln_kernel, eps=eps),
        out_shape=jax.ShapeDtypeStruct((M, H), out_dtype),
        grid=(M // tm,),
        in_specs=[pl.BlockSpec((tm, H), lambda i: (i, 0)),
                  pl.BlockSpec((1, H), lambda i: (0, 0)),
                  pl.BlockSpec((1, H), lambda i: (0, 0))],
        out_specs=pl.BlockSpec((tm, H), lambda i: (i, 0)),
        compiler_params=_cp("parallel"),
    )(x, g, b)


def qkv_linear(x, w, b, nh, dh):
    # (M, H) @ (H, 3H) -> head-major (3*nh, M, dh) bf16 slab.
    M, H = x.shape
    N3 = w.shape[1]
    nh3 = 3 * nh
    tm = _row_tile(M, _TARGET_TM)
    return pl.pallas_call(
        partial(qkv_linear_kernel, nh3=nh3, dh=dh),
        out_shape=jax.ShapeDtypeStruct((nh3, M, dh), jnp.bfloat16),
        grid=(M // tm,),
        in_specs=[pl.BlockSpec((tm, H), lambda i: (i, 0)),
                  pl.BlockSpec((H, N3), lambda i: (0, 0)),
                  pl.BlockSpec((1, N3), lambda i: (0, 0))],
        out_specs=pl.BlockSpec((nh3, tm, dh), lambda i: (0, i, 0)),
        compiler_params=_cp("parallel"),
    )(x, w, b)


def attention(qkv, mask3, nh, S):
    # qkv:(3*nh, B*S, dh) bf16 head-major  mask3:(B,1,S) f32 keep-mask
    nh3, M, dh = qkv.shape
    B = M // S
    tq = _lane_tile(S, _ATTN_TQ)
    tk = _lane_tile(S, _ATTN_TK)
    nq, nk = S // tq, S // tk
    return pl.pallas_call(
        partial(flash_attn_kernel, exp_bf16=_EXP_BF16),
        out_shape=jax.ShapeDtypeStruct((nh, M, dh), jnp.bfloat16),
        grid=(B, nh, nq, nk),
        in_specs=[
            pl.BlockSpec((1, tq, dh),
                         lambda b, h, qi, ki: (h, b * nq + qi, 0)),
            pl.BlockSpec((1, tk, dh),
                         lambda b, h, qi, ki: (nh + h, b * nk + ki, 0)),
            pl.BlockSpec((1, tk, dh),
                         lambda b, h, qi, ki: (2 * nh + h, b * nk + ki, 0)),
            pl.BlockSpec((1, 1, tk),
                         lambda b, h, qi, ki: (b, 0, ki)),
        ],
        out_specs=pl.BlockSpec((1, tq, dh),
                               lambda b, h, qi, ki: (h, b * nq + qi, 0)),
        scratch_shapes=[pltpu.VMEM((tq, 1), jnp.float32),
                        pltpu.VMEM((tq, 1), jnp.float32),
                        pltpu.VMEM((tq, dh), jnp.float32)],
        compiler_params=_cp("parallel", "parallel", "parallel", "arbitrary"),
    )(qkv, qkv, qkv, mask3)


def proj_add_ln(ctx, res, w, b, g, beta, nh, eps=1e-5, out_dtype=jnp.bfloat16):
    # ctx:(nh, M, dh) head-major; res:(M, H)
    _, M, dh = ctx.shape
    K, N = w.shape
    tm = _row_tile(M, _TARGET_TM)
    return pl.pallas_call(
        partial(proj_add_ln_kernel, eps=eps, nh=nh),
        out_shape=jax.ShapeDtypeStruct((M, N), out_dtype),
        grid=(M // tm,),
        in_specs=[pl.BlockSpec((nh, tm, dh), lambda i: (0, i, 0)),
                  pl.BlockSpec((tm, N), lambda i: (i, 0)),
                  pl.BlockSpec((K, N), lambda i: (0, 0)),
                  pl.BlockSpec((1, N), lambda i: (0, 0)),
                  pl.BlockSpec((1, N), lambda i: (0, 0)),
                  pl.BlockSpec((1, N), lambda i: (0, 0))],
        out_specs=pl.BlockSpec((tm, N), lambda i: (i, 0)),
        compiler_params=_cp("parallel"),
    )(ctx, res, w, b, g, beta)


def ffn_add_ln(x, w1, b1, w2, b2, g, beta, eps=1e-5, out_dtype=jnp.bfloat16):
    M, H = x.shape
    I = w1.shape[1]
    tm = _row_tile(M, _TARGET_TM)
    ti = _lane_tile(I, _TARGET_TI)
    return pl.pallas_call(
        partial(ffn_add_ln_kernel, eps=eps),
        out_shape=jax.ShapeDtypeStruct((M, H), out_dtype),
        grid=(M // tm, I // ti),
        in_specs=[pl.BlockSpec((tm, H), lambda i, ii: (i, 0)),
                  pl.BlockSpec((H, ti), lambda i, ii: (0, ii)),
                  pl.BlockSpec((1, ti), lambda i, ii: (0, ii)),
                  pl.BlockSpec((ti, H), lambda i, ii: (ii, 0)),
                  pl.BlockSpec((1, H), lambda i, ii: (0, 0)),
                  pl.BlockSpec((1, H), lambda i, ii: (0, 0)),
                  pl.BlockSpec((1, H), lambda i, ii: (0, 0))],
        out_specs=pl.BlockSpec((tm, H), lambda i, ii: (i, 0)),
        scratch_shapes=[pltpu.VMEM((tm, H), jnp.float32)],
        compiler_params=_cp("parallel", "arbitrary"),
    )(x, w1, b1, w2, b2, g, beta)


def bilstm(xg, whh_f, hd):
    # xg:(B, S, 8*hd) bf16 stays in HBM; streamed per time step inside the kernel.
    B, S, G8 = xg.shape
    # Batch-chunk grid so v7x's two TensorCores both get work when B allows
    # (chunk must be the full batch or a multiple of 8 for lane/sublane rules).
    nb = 2 if (B % 2 == 0 and (B // 2) % 8 == 0) else 1
    bc = B // nb
    return pl.pallas_call(
        partial(bilstm_kernel, seq_len=S, hd=hd, bc=bc),
        out_shape=jax.ShapeDtypeStruct((B, 2 * hd), jnp.float32),
        grid=(nb,),
        in_specs=[pl.BlockSpec(memory_space=pl.ANY),
                  pl.BlockSpec((hd, 4 * hd), lambda i: (0, 0))],
        out_specs=pl.BlockSpec((bc, 2 * hd), lambda i: (i, 0)),
        scratch_shapes=[pltpu.VMEM((2, bc, 1, G8), jnp.bfloat16),
                        pltpu.SemaphoreType.DMA((2,))],
        compiler_params=_cp("parallel"),
    )(xg, whh_f)


# ----------------------------------------------------------------------------
# Parameter init (deterministic, synthetic — no checkpoint loading)
# ----------------------------------------------------------------------------

def init_params(key, cfg):
    H, I = cfg["hidden"], cfg["intermediate"]
    nh = cfg["heads"]
    dh = H // nh
    hd, nl = cfg["lstm_hidden"], cfg["num_labels"]
    keys = iter(jax.random.split(key, 256))

    def w(shape, scale=0.02, dtype=jnp.bfloat16):
        return (jax.random.normal(next(keys), shape, jnp.float32) * scale).astype(dtype)

    def ones(shape):
        return jnp.ones(shape, jnp.float32)

    def zeros(shape):
        return jnp.zeros(shape, jnp.float32)

    params = {
        "word_emb": w((cfg["vocab"], H), dtype=jnp.float32),
        "pos_emb": w((cfg["max_pos"], H), dtype=jnp.float32),
        "type_emb": w((1, H), dtype=jnp.float32),
        "emb_ln_g": ones((1, H)),
        "emb_ln_b": zeros((1, H)),
        "layers": [],
        # BiLSTM: input projections fused for both directions (H, 8*hd) with
        # b_ih + b_hh folded into the bias; forward recurrent weights (hd, 4*hd).
        # whh_b is kept for completeness but never influences lstm_out[:, -1, :]
        # (the backward state at position S-1 is its first step from zero state).
        "lstm": {
            "wih_cat": w((H, 8 * hd)),
            "b_cat": zeros((1, 8 * hd)),
            "whh_f": w((hd, 4 * hd)),
            "whh_b": w((hd, 4 * hd)),   # unused by this forward (see comment)
        },
        "fc_w": w((2 * hd, nl)),
        "fc_b": zeros((1, nl)),
    }

    qscale = 1.0 / math.sqrt(dh)
    for _ in range(cfg["layers"]):
        # Fused Q|K|V projection; the attention softmax scale 1/sqrt(dh) is
        # folded into the Q columns (weights and bias) at parameter-prep time.
        wqkv = jax.random.normal(next(keys), (H, 3 * H), jnp.float32) * 0.02
        wqkv = jnp.concatenate([wqkv[:, :H] * qscale, wqkv[:, H:]], axis=1)
        bqkv = zeros((1, 3 * H))
        bqkv = jnp.concatenate([bqkv[:, :H] * qscale, bqkv[:, H:]], axis=1)
        params["layers"].append({
            "wqkv": wqkv.astype(jnp.bfloat16), "bqkv": bqkv,
            "wo": w((H, H)), "bo": zeros((1, H)),
            "ln1_g": ones((1, H)), "ln1_b": zeros((1, H)),
            "w1": w((H, I)), "b1": zeros((1, I)),
            "w2": w((I, H)), "b2": zeros((1, H)),
            "ln2_g": ones((1, H)), "ln2_b": zeros((1, H)),
        })
    return params


# ----------------------------------------------------------------------------
# Forward pass (glue in JAX, hot paths in Pallas kernels above)
# ----------------------------------------------------------------------------

def forward(params, input_ids, attention_mask, cfg):
    B, S = input_ids.shape
    H, nh = cfg["hidden"], cfg["heads"]
    assert H % nh == 0
    dh = H // nh
    hd = cfg["lstm_hidden"]
    pad = cfg["pad_idx"]
    M = B * S

    # --- XLM-RoBERTa embeddings (gathers are XLA glue; LN in Pallas) ---
    mask_pad = (input_ids != pad).astype(jnp.int32)
    position_ids = jnp.cumsum(mask_pad, axis=1) * mask_pad + pad   # XLM-R position ids
    emb = (jnp.take(params["word_emb"], input_ids, axis=0)
           + jnp.take(params["pos_emb"], position_ids, axis=0)
           + params["type_emb"][0])
    x = layernorm(emb.reshape(M, H).astype(jnp.bfloat16),
                  params["emb_ln_g"], params["emb_ln_b"])          # bf16 (M, H)

    # keep-mask fed directly to the attention kernel (bias built in-kernel)
    mask3 = attention_mask.astype(jnp.float32).reshape(B, 1, S)

    # --- Transformer encoder layers ---
    for layer in params["layers"]:
        residual = x
        qkv = qkv_linear(x, layer["wqkv"], layer["bqkv"], nh, dh)  # (3nh, M, dh)
        ctx = attention(qkv, mask3, nh, S)                         # (nh, M, dh)
        # fused: head merge + out-proj + residual + LayerNorm1
        x = proj_add_ln(ctx, residual, layer["wo"], layer["bo"],
                        layer["ln1_g"], layer["ln1_b"], nh=nh)
        # fused: blocked FFN (matmul, gelu, matmul) + residual + LayerNorm2
        x = ffn_add_ln(x, layer["w1"], layer["b1"], layer["w2"], layer["b2"],
                       layer["ln2_g"], layer["ln2_b"])

    # --- BiLSTM: input gates for both directions as one big matmul (bf16, HBM) ---
    xg = linear(x, params["lstm"]["wih_cat"], params["lstm"]["b_cat"],
                out_dtype=jnp.bfloat16)                            # (M, 8*hd)
    xg = xg.reshape(B, S, 8 * hd)                                  # free reshape
    last = bilstm(xg, params["lstm"]["whh_f"], hd)                 # (B, 2*hd) f32
    # last == lstm_out[:, -1, :] = [fwd hidden at t=S-1 | bwd hidden at pos S-1]

    # --- final classifier (label dim padded to 128 lanes, then sliced) ---
    nl = params["fc_w"].shape[1]
    nl_p = ((nl + 127) // 128) * 128
    fc_w = jnp.pad(params["fc_w"], ((0, 0), (0, nl_p - nl)))
    fc_b = jnp.pad(params["fc_b"], ((0, 0), (0, nl_p - nl)))
    logits = linear(last, fc_w, fc_b, out_dtype=jnp.float32)[:, :nl]
    return logits


# ----------------------------------------------------------------------------

if __name__ == "__main__":
    cfg = dict(
        vocab=100, hidden=32, heads=2, intermediate=64, layers=2,
        max_pos=20, pad_idx=1, lstm_hidden=16, num_labels=3,
    )
    B, S = 2, 8

    key = jax.random.PRNGKey(0)
    pkey, dkey = jax.random.split(key)
    params = init_params(pkey, cfg)

    attention_mask = jnp.array(
        [[1, 1, 1, 1, 1, 1, 1, 1],
         [1, 1, 1, 1, 1, 0, 0, 0]], dtype=jnp.int32)
    input_ids = jax.random.randint(dkey, (B, S), 2, cfg["vocab"], dtype=jnp.int32)
    input_ids = jnp.where(attention_mask == 1, input_ids, cfg["pad_idx"])

    logits = forward(params, input_ids, attention_mask, cfg)
    jax.block_until_ready(logits)
    assert logits.shape == (B, cfg["num_labels"])
    assert bool(jnp.all(jnp.isfinite(logits)))
    print("KERNEL_OK")
</pallas_src>

<mosaic_0001>
module attributes {stable_mosaic.version = 11 : i64} {
  func.func @ln_kernel(%arg0: i32, %arg1: memref<16x32xbf16, #tpu.memory_space<vmem>>, %arg2: memref<1x32xf32, #tpu.memory_space<vmem>>, %arg3: memref<1x32xf32, #tpu.memory_space<vmem>>, %arg4: memref<16x32xbf16, #tpu.memory_space<vmem>>) attributes {dimension_semantics = [#tpu.dimension_semantics<parallel>], iteration_bounds = array<i64: 1>, scalar_prefetch = 0 : i64, scratch_operands = 0 : i64, tpu.core_type = #tpu.core_type<tc>, window_params = [{transform_indices = @transform_0, window_bounds = array<i64: 16, 32>}, {pipeline_mode = #tpu.pipeline_mode<synchronous>, transform_indices = @transform_1, window_bounds = array<i64: 1, 32>}, {pipeline_mode = #tpu.pipeline_mode<synchronous>, transform_indices = @transform_2, window_bounds = array<i64: 1, 32>}, {transform_indices = @transform_3, window_bounds = array<i64: 16, 32>}]} {
    %c0 = arith.constant 0 : index
    %c0_0 = arith.constant 0 : index
    %0 = vector.load %arg1[%c0, %c0_0] : memref<16x32xbf16, #tpu.memory_space<vmem>>, vector<16x32xbf16>
    %1 = arith.extf %0 : vector<16x32xbf16> to vector<16x32xf32>
    %cst = arith.constant dense<0.000000e+00> : vector<16xf32>
    %2 = vector.multi_reduction <add>, %1, %cst [1] : vector<16x32xf32> to vector<16xf32>
    %3 = vector.shape_cast %2 : vector<16xf32> to vector<16x1xf32>
    %cst_1 = arith.constant 3.200000e+01 : f32
    %4 = vector.broadcast %cst_1 : f32 to vector<16x1xf32>
    %5 = arith.divf %3, %4 : vector<16x1xf32>
    %6 = vector.broadcast %5 : vector<16x1xf32> to vector<16x32xf32>
    %7 = arith.subf %1, %6 : vector<16x32xf32>
    %8 = arith.mulf %7, %7 : vector<16x32xf32>
    %cst_2 = arith.constant dense<0.000000e+00> : vector<16xf32>
    %9 = vector.multi_reduction <add>, %8, %cst_2 [1] : vector<16x32xf32> to vector<16xf32>
    %10 = vector.shape_cast %9 : vector<16xf32> to vector<16x1xf32>
    %cst_3 = arith.constant 3.200000e+01 : f32
    %11 = vector.broadcast %cst_3 : f32 to vector<16x1xf32>
    %12 = arith.divf %10, %11 : vector<16x1xf32>
    %13 = vector.broadcast %5 : vector<16x1xf32> to vector<16x32xf32>
    %14 = arith.subf %1, %13 : vector<16x32xf32>
    %cst_4 = arith.constant 9.99999974E-6 : f32
    %15 = vector.broadcast %cst_4 : f32 to vector<16x1xf32>
    %16 = arith.addf %12, %15 : vector<16x1xf32>
    %17 = math.rsqrt %16 : vector<16x1xf32>
    %18 = vector.broadcast %17 : vector<16x1xf32> to vector<16x32xf32>
    %19 = arith.mulf %14, %18 : vector<16x32xf32>
    %c0_5 = arith.constant 0 : index
    %c0_6 = arith.constant 0 : index
    %20 = vector.load %arg2[%c0_5, %c0_6] : memref<1x32xf32, #tpu.memory_space<vmem>>, vector<1x32xf32>
    %21 = vector.broadcast %20 : vector<1x32xf32> to vector<16x32xf32>
    %22 = arith.mulf %19, %21 : vector<16x32xf32>
    %c0_7 = arith.constant 0 : index
    %c0_8 = arith.constant 0 : index
    %23 = vector.load %arg3[%c0_7, %c0_8] : memref<1x32xf32, #tpu.memory_space<vmem>>, vector<1x32xf32>
    %24 = vector.broadcast %23 : vector<1x32xf32> to vector<16x32xf32>
    %25 = arith.addf %22, %24 : vector<16x32xf32>
    %26 = arith.truncf %25 : vector<16x32xf32> to vector<16x32xbf16>
    %c0_9 = arith.constant 0 : index
    %c0_10 = arith.constant 0 : index
    %27 = vector.load %arg4[%c0_9, %c0_10] : memref<16x32xbf16, #tpu.memory_space<vmem>>, vector<16x32xbf16>
    tpu.vector_store %arg4[%c0_9, %c0_10], %26 {strides = array<i32>} : memref<16x32xbf16, #tpu.memory_space<vmem>>, vector<16x32xbf16>,
    return
  }
  func.func @transform_0(%arg0: i32) -> (i32, i32) {
    %c0_i32 = arith.constant 0 : i32
    %c0_i32_0 = arith.constant 0 : i32
    return %arg0, %c0_i32 : i32, i32
  }
  func.func @transform_1(%arg0: i32) -> (i32, i32) {
    %c0_i32 = arith.constant 0 : i32
    %c0_i32_0 = arith.constant 0 : i32
    %c0_i32_1 = arith.constant 0 : i32
    return %c0_i32, %c0_i32_0 : i32, i32
  }
  func.func @transform_2(%arg0: i32) -> (i32, i32) {
    %c0_i32 = arith.constant 0 : i32
    %c0_i32_0 = arith.constant 0 : i32
    %c0_i32_1 = arith.constant 0 : i32
    return %c0_i32, %c0_i32_0 : i32, i32
  }
  func.func @transform_3(%arg0: i32) -> (i32, i32) {
    %c0_i32 = arith.constant 0 : i32
    %c0_i32_0 = arith.constant 0 : i32
    return %arg0, %c0_i32 : i32, i32
  }
}

</mosaic_0001>

<llo_original>
// kernel: tpu_custom_call.1
$region0: #{tpu_custom_call.1}
  #allocation0 [shape = 'u32[]', space=smem, size = 0x4, offset = 0x4, fixed_abs, tag = 'smem constant byte address 0x4 - core index']
  #allocation1 [shape = 'u32[144,128]{1,0:T(1,128)}', space=vmem, size = 0x12000, scoped, tag = 'internal scratch']
  %s0 = inlined_call_operand.hbm [shape: bf16[16,32], index: 0, kind: input, shape index: {}]
  %s1 = inlined_call_operand.hbm [shape: f32[1,32], index: 1, kind: input, shape index: {}]
  %s2 = inlined_call_operand.hbm [shape: f32[1,32], index: 2, kind: input, shape index: {}]
  %s3 = inlined_call_operand.hbm [shape: bf16[16,32], index: 3, kind: output, shape index: {}]
  %s4 = sld [smem:[#allocation0]]
  $region34: #{tpu_custom_call.1} parent=0
    _
  %s6 = ssub.s32 1, %s4
  %s7 = scalar_select 0, %s6, %s4
  $region1: #{tpu_custom_call.1} parent=0
    #allocation2 [shape = 'u8[4096]{0}', space=vmem, size = 0x1000, scoped, tag = 'input window, operand 0, single buffered']
    #allocation3 [shape = 's32[1]{0}', space=sflag, size = 0x4, scoped, tag = 'scoped memory for tpu_custom_call.1']
    #allocation4 [shape = 's32[1]{0}', space=sflag, size = 0x4, scoped, tag = 'scoped memory for tpu_custom_call.1']
    #allocation5 [shape = 'u8[512]{0}', space=vmem, size = 0x400, scoped, tag = 'input window, operand 1, single buffered']
    #allocation6 [shape = 's32[1]{0}', space=sflag, size = 0x4, scoped, tag = 'scoped memory for tpu_custom_call.1']
    #allocation7 [shape = 'u8[512]{0}', space=vmem, size = 0x400, scoped, tag = 'input window, operand 2, single buffered']
    #allocation8 [shape = 'u8[4096]{0}', space=vmem, size = 0x1000, scoped, tag = 'output window, operand 0, single buffered']
    %8 = vsyncpa [#allocation3], 0
    %9 = vsyncpa [#allocation6], 0
    %10 = vsyncpa [#allocation4], 0
    // Predicated region
    $region2: #{tpu_custom_call.1} parent=1 // pred_check
      _
    $region3: #{tpu_custom_call.1} parent=1 // pred_check_branch
      %12 = sbr.rel (0) target = $region5
    $region4: #{tpu_custom_call.1} parent=1 // pred_region
      %s14 = ssub.s32 128, 128
      %15 = vsyncadd [#allocation3], %s14
      %s16 = sshll.u32 [#allocation2], 4
      %s17 = int_to_ptr.vmem [resolvable:$true] %s16
      %22 = dma.hbm_to_vmem [thread:$0]  %s0, 128, %s17, [#allocation3], 64, 64, 4
    $region5: #{tpu_custom_call.1} parent=1 // pred_fallthru
      _
    // Predicated region
    $region6: #{tpu_custom_call.1} parent=1 // pred_check
      _
    $region7: #{tpu_custom_call.1} parent=1 // pred_check_branch
      %24 = sbr.rel (0) target = $region9
    $region8: #{tpu_custom_call.1} parent=1 // pred_region
      %s26 = ssub.s32 16, 16
      %27 = vsyncadd [#allocation6], %s26
      %s29 = sshll.u32 [#allocation5], 4
      %s30 = int_to_ptr.vmem [resolvable:$true] %s29
      %32 = dma.hbm_to_vmem [thread:$0]  %s1, 16, %s30, [#allocation6]
    $region9: #{tpu_custom_call.1} parent=1 // pred_fallthru
      _
    // Predicated region
    $region10: #{tpu_custom_call.1} parent=1 // pred_check
      _
    $region11: #{tpu_custom_call.1} parent=1 // pred_check_branch
      %34 = sbr.rel (0) target = $region13
    $region12: #{tpu_custom_call.1} parent=1 // pred_region
      %s36 = ssub.s32 16, 16
      %37 = vsyncadd [#allocation6], %s36
      %s39 = sshll.u32 [#allocation7], 4
      %s40 = int_to_ptr.vmem [resolvable:$true] %s39
      %42 = dma.hbm_to_vmem [thread:$0]  %s2, 16, %s40, [#allocation6]
    $region13: #{tpu_custom_call.1} parent=1 // pred_fallthru
      _
    // Predicated region
    $region14: #{tpu_custom_call.1} parent=1 // pred_check
      _
    $region15: #{tpu_custom_call.1} parent=1 // pred_check_branch
      %44 = sbr.rel (0) target = $region17
    $region16: #{tpu_custom_call.1} parent=1 // pred_region
      %45 = dma.done [#allocation3], 128
    $region17: #{tpu_custom_call.1} parent=1 // pred_fallthru
      _
    // Predicated region
    $region18: #{tpu_custom_call.1} parent=1 // pred_check
      _
    $region19: #{tpu_custom_call.1} parent=1 // pred_check_branch
      %47 = sbr.rel (0) target = $region21
    $region20: #{tpu_custom_call.1} parent=1 // pred_region
      %48 = dma.done [#allocation6], 16
    $region21: #{tpu_custom_call.1} parent=1 // pred_fallthru
      _
    // Predicated region
    $region22: #{tpu_custom_call.1} parent=1 // pred_check
      _
    $region23: #{tpu_custom_call.1} parent=1 // pred_check_branch
      %50 = sbr.rel (0) target = $region25
    $region24: #{tpu_custom_call.1} parent=1 // pred_region
      %51 = dma.done [#allocation6], 16
    $region25: #{tpu_custom_call.1} parent=1 // pred_fallthru
      _
    %v52 = vld [vmem:[#allocation2] sm:$0xf]
    %v53 = vld [vmem:[#allocation2 + $0x4] sm:$0xf]
    %v54 = vunpack.c.l.bf16 %v52
    %v55 = vunpack.c.l.bf16 %v53
    %vm56 = vcmask 261120
    %v57 = vsel %vm56, %v54, 0.0
    %58 = vadd.xlane.f32.xlu0 %v57
    %v59 = vpop.xlane.xlu0 %58
    %v60 = vsel %vm56, %v55, 0.0
    %61 = vadd.xlane.f32.xlu0 %v60
    %v62 = vpop.xlane.xlu0 %61
    %v63 = vrcp.pop 32.0
    %v64 = vmul.f32 %v59, %v63
    %v65 = vmul.f32 %v62, %v63
    %v66 = vsub.f32 %v54, %v64
    %v67 = vsub.f32 %v55, %v65
    %v68 = vmul.f32 %v66, %v66
    %v69 = vmul.f32 %v67, %v67
    %v70 = vsel %vm56, %v68, 0.0
    %71 = vadd.xlane.f32.xlu0 %v70
    %v72 = vpop.xlane.xlu0 %71
    %v73 = vsel %vm56, %v69, 0.0
    %74 = vadd.xlane.f32.xlu0 %v73
    %v75 = vpop.xlane.xlu0 %74
    %v76 = vmul.f32 %v72, %v63
    %v77 = vmul.f32 %v75, %v63
    %v78 = vadd.f32 %v76, 1e-05
    %v79 = vadd.f32 %v77, 1e-05
    %v80 = vrsqrt.pop %v78
    %v81 = vrsqrt.pop %v79
    %v82 = vmul.f32 %v66, %v80
    %v83 = vmul.f32 %v67, %v81
    %v84 = vld [vmem:[#allocation5] sm:$0x1]
    %v86 = vlaneseq
    %v87 = vshrl.u32 %v86, 7
    %v88 = vsub.s32 0, %v87
    %v89 = vrot.slane %v84, %v88
    %v91 = vmul.f32 %v82, %v89
    %v92 = vmul.f32 %v83, %v89
    %v93 = vld [vmem:[#allocation7] sm:$0x1]
    %v95 = vlaneseq
    %v96 = vshrl.u32 %v95, 7
    %v97 = vsub.s32 0, %v96
    %v98 = vrot.slane %v93, %v97
    %v100 = vadd.f32 %v91, %v98
    %v101 = vadd.f32 %v92, %v98
    %v102 = vpack.c.bf16 %v101, %v100
    %v104 = vunpack.c.l.b16 %v102
    %v105 = vunpack.c.h.b16 %v102
    %v106 = vpack.c.b16 %v104, %v104
    %v107 = vpack.c.b16 %v105, %v105
    %vm110 = vcmask 257024
    %111 = vst.msk [vmem:[#allocation8] sm:$0xf] %vm110, %v106
    %112 = vst.msk [vmem:[#allocation8 + $0x4] sm:$0xf] %vm110, %v107
    // Predicated region
    $region26: #{tpu_custom_call.1} parent=1 // pred_check
      _
    $region27: #{tpu_custom_call.1} parent=1 // pred_check_branch
      %114 = sbr.rel (0) target = $region29
    $region28: #{tpu_custom_call.1} parent=1 // pred_region
      %s116 = ssub.s32 128, 128
      %117 = vsyncadd [#allocation4], %s116
      %s118 = sshll.u32 [#allocation8], 4
      %s119 = int_to_ptr.vmem [resolvable:$true] %s118
      %124 = dma.vmem_to_hbm [thread:$0]  %s119, 128, %s3, [#allocation4], 64, 64, 4
    $region29: #{tpu_custom_call.1} parent=1 // pred_fallthru
      _
    // Predicated region
    $region30: #{tpu_custom_call.1} parent=1 // pred_check
      _
    $region31: #{tpu_custom_call.1} parent=1 // pred_check_branch
      %126 = sbr.rel (0) target = $region33
    $region32: #{tpu_custom_call.1} parent=1 // pred_region
      %127 = dma.done [#allocation4], 128
    $region33: #{tpu_custom_call.1} parent=1 // pred_fallthru
      _
    %128 = vsyncpa [#allocation3], 1
    %129 = vsyncpa [#allocation6], 1
    %130 = vsyncpa [#allocation4], 1

</llo_original>
